<compile_context>
chip_gen: v5e
topology: v5e:2x2
jax: 0.10.0
libtpu: 0.0.40
codegen_flags: <defaults>
</compile_context>

<pallas_src>
import functools

import jax
import jax.numpy as jnp
import numpy as np
from jax.experimental import pallas as pl
from jax.experimental.pallas import tpu as pltpu

SEQ = 196
FEAT = 263

# Max rows of the flattened (rows, 263) slab per grid step.
# 2048 * 263 * 4 B ~= 2.15 MiB per buffer; with double-buffered in + out this
# stays well inside the default scoped VMEM on v5e (16 MiB), v6e (32 MiB) and
# v7x (32 MiB), while being large enough (>1 MiB) to sit on the ~85% tiled-copy
# roofline plateau and amortize the ~0.35 us/step grid overhead.
_TM_MAX = 2048


def _copy_kernel(x_ref, o_ref):
    # Pure element copy of one (tm, 263) tile.
    o_ref[...] = x_ref[...]


def _pick_block_rows(total_rows: int) -> int:
    if total_rows <= _TM_MAX:
        # Single block whose dims equal the full array dims (always legal,
        # even when total_rows is not a multiple of 8).
        return total_rows
    # _TM_MAX is a multiple of 8, so the (8, 128) block constraint holds; a
    # ragged final block is handled by Pallas' edge masking.
    return _TM_MAX


@functools.partial(jax.jit, donate_argnums=(0,))
def continous_rot_repr_decoder(module_input: jax.Array) -> jax.Array:
    """Equivalent of module_input.view(-1, 196, 263)."""
    total = module_input.size
    assert total % (SEQ * FEAT) == 0, (
        f"input with {total} elements cannot be viewed as (-1, {SEQ}, {FEAT})")

    # Flatten to a contiguous 2D slab (rows, 263): metadata-only.
    total_rows = total // FEAT
    flat = jnp.reshape(module_input, (total_rows, FEAT))

    tm = _pick_block_rows(total_rows)
    grid = (pl.cdiv(total_rows, tm),)
    nbytes = total * flat.dtype.itemsize

    out2d = pl.pallas_call(
        _copy_kernel,
        out_shape=jax.ShapeDtypeStruct((total_rows, FEAT), flat.dtype),
        grid_spec=pl.GridSpec(
            grid=grid,
            in_specs=[pl.BlockSpec((tm, FEAT), lambda i: (i, 0))],
            out_specs=pl.BlockSpec((tm, FEAT), lambda i: (i, 0)),
        ),
        # Output aliases the (donated) input buffer: copy runs in place,
        # halving the HBM footprint of the round trip.
        input_output_aliases={0: 0},
        # Advertise this as a pure mem-bound op (read + write of the tensor).
        cost_estimate=pl.CostEstimate(
            flops=0, transcendentals=0, bytes_accessed=2 * nbytes),
        compiler_params=pltpu.CompilerParams(
            dimension_semantics=("parallel",)),
    )(flat)

    # Metadata-only reshape back to the module's output shape.
    # TODO(synk): the whole forward is a view; if a pallas_call were not
    # required in the graph, returning jnp.reshape(module_input, (-1, 196, 263))
    # directly would remove all HBM traffic.
    return jnp.reshape(out2d, (-1, SEQ, FEAT))


if __name__ == "__main__":
    key = jax.random.PRNGKey(0)
    batch = 2
    x = jax.random.normal(key, (batch, SEQ * FEAT), dtype=jnp.float32)

    # Host-side reference taken BEFORE the call (the wrapper donates its input).
    ref = np.asarray(jax.device_get(x)).reshape(-1, SEQ, FEAT)

    out = continous_rot_repr_decoder(x)
    out = jax.block_until_ready(out)

    assert out.shape == (batch, SEQ, FEAT), out.shape
    assert out.dtype == jnp.float32
    assert np.array_equal(np.asarray(jax.device_get(out)), ref)

    print("KERNEL_OK")
</pallas_src>

<mosaic_0001>
module attributes {stable_mosaic.version = 11 : i64} {
  func.func @_copy_kernel(%arg0: i32, %arg1: memref<392x263xf32, #tpu.memory_space<vmem>>, %arg2: memref<392x263xf32, #tpu.memory_space<vmem>>) attributes {dimension_semantics = [#tpu.dimension_semantics<parallel>], iteration_bounds = array<i64: 1>, scalar_prefetch = 0 : i64, scratch_operands = 0 : i64, tpu.core_type = #tpu.core_type<tc>, window_params = [{transform_indices = @transform_0, window_bounds = array<i64: 392, 263>}, {transform_indices = @transform_1, window_bounds = array<i64: 392, 263>}]} {
    %c0 = arith.constant 0 : index
    %c0_0 = arith.constant 0 : index
    %0 = vector.load %arg1[%c0, %c0_0] : memref<392x263xf32, #tpu.memory_space<vmem>>, vector<392x263xf32>
    %c0_1 = arith.constant 0 : index
    %c0_2 = arith.constant 0 : index
    %1 = vector.load %arg2[%c0_1, %c0_2] : memref<392x263xf32, #tpu.memory_space<vmem>>, vector<392x263xf32>
    tpu.vector_store %arg2[%c0_1, %c0_2], %0 {strides = array<i32>} : memref<392x263xf32, #tpu.memory_space<vmem>>, vector<392x263xf32>,
    return
  }
  func.func @transform_0(%arg0: i32) -> (i32, i32) {
    %c0_i32 = arith.constant 0 : i32
    %c0_i32_0 = arith.constant 0 : i32
    return %arg0, %c0_i32 : i32, i32
  }
  func.func @transform_1(%arg0: i32) -> (i32, i32) {
    %c0_i32 = arith.constant 0 : i32
    %c0_i32_0 = arith.constant 0 : i32
    return %arg0, %c0_i32 : i32, i32
  }
}

</mosaic_0001>

<llo_original>
// kernel: continous_rot_repr_decoder.1
$region0: #{continous_rot_repr_decoder.1}
  #allocation0 [shape = 'u32[]', space=smem, size = 0x4, offset = 0x4, fixed_abs, tag = 'smem constant byte address 0x4 - core index']
  #allocation1 [shape = 'u32[72,128]{1,0:T(1,128)}', space=vmem, size = 0x9000, scoped, tag = 'internal scratch']
  %s0 = inlined_call_operand.vmem [shape: f32[392,263], index: 0, kind: input, shape index: {}, may-alias: {0,1}]
  %s1 = inlined_call_operand.vmem [shape: f32[392,263], index: 1, kind: output, shape index: {}, may-alias: {0,1}]
  %s2 = sld [smem:[#allocation0]]
  $region14: #{continous_rot_repr_decoder.1} parent=0
    _
  %s4 = ssub.s32 1, %s2
  %s5 = scalar_select 0, %s4, %s2
  // Predicated region
  $region2: #{continous_rot_repr_decoder.1} parent=0 // pred_check
    _
  $region3: #{continous_rot_repr_decoder.1} parent=0 // pred_check_branch
    %7 = sbr.rel (0) target = $region5
  $region4: #{continous_rot_repr_decoder.1} parent=0 // pred_region
    _
  $region5: #{continous_rot_repr_decoder.1} parent=0 // pred_fallthru
    _
  %v8 = vld [vmem:[%s0] sm:$0xff]
  %v9 = vld [vmem:[%s0 + $0x8] sm:$0xff]
  %v10 = vld [vmem:[%s0 + $0x10] sm:$0xff]
  %v11 = vld [vmem:[%s0 + $0x18] sm:$0xff]
  %v12 = vld [vmem:[%s0 + $0x20] sm:$0xff]
  %v13 = vld [vmem:[%s0 + $0x28] sm:$0xff]
  %v14 = vld [vmem:[%s0 + $0x30] sm:$0xff]
  %v15 = vld [vmem:[%s0 + $0x38] sm:$0xff]
  %v16 = vld [vmem:[%s0 + $0x40] sm:$0xff]
  %v17 = vld [vmem:[%s0 + $0x48] sm:$0xff]
  %v18 = vld [vmem:[%s0 + $0x50] sm:$0xff]
  %v19 = vld [vmem:[%s0 + $0x58] sm:$0xff]
  %v20 = vld [vmem:[%s0 + $0x60] sm:$0xff]
  %v21 = vld [vmem:[%s0 + $0x68] sm:$0xff]
  %v22 = vld [vmem:[%s0 + $0x70] sm:$0xff]
  %v23 = vld [vmem:[%s0 + $0x78] sm:$0xff]
  %v24 = vld [vmem:[%s0 + $0x80] sm:$0xff]
  %v25 = vld [vmem:[%s0 + $0x88] sm:$0xff]
  %v26 = vld [vmem:[%s0 + $0x90] sm:$0xff]
  %v27 = vld [vmem:[%s0 + $0x98] sm:$0xff]
  %v28 = vld [vmem:[%s0 + $0xa0] sm:$0xff]
  %v29 = vld [vmem:[%s0 + $0xa8] sm:$0xff]
  %v30 = vld [vmem:[%s0 + $0xb0] sm:$0xff]
  %v31 = vld [vmem:[%s0 + $0xb8] sm:$0xff]
  %v32 = vld [vmem:[%s0 + $0xc0] sm:$0xff]
  %v33 = vld [vmem:[%s0 + $0xc8] sm:$0xff]
  %v34 = vld [vmem:[%s0 + $0xd0] sm:$0xff]
  %v35 = vld [vmem:[%s0 + $0xd8] sm:$0xff]
  %v36 = vld [vmem:[%s0 + $0xe0] sm:$0xff]
  %v37 = vld [vmem:[%s0 + $0xe8] sm:$0xff]
  %v38 = vld [vmem:[%s0 + $0xf0] sm:$0xff]
  %v39 = vld [vmem:[%s0 + $0xf8] sm:$0xff]
  %v40 = vld [vmem:[%s0 + $0x100] sm:$0xff]
  %v41 = vld [vmem:[%s0 + $0x108] sm:$0xff]
  %v42 = vld [vmem:[%s0 + $0x110] sm:$0xff]
  %v43 = vld [vmem:[%s0 + $0x118] sm:$0xff]
  %v44 = vld [vmem:[%s0 + $0x120] sm:$0xff]
  %v45 = vld [vmem:[%s0 + $0x128] sm:$0xff]
  %v46 = vld [vmem:[%s0 + $0x130] sm:$0xff]
  %v47 = vld [vmem:[%s0 + $0x138] sm:$0xff]
  %v48 = vld [vmem:[%s0 + $0x140] sm:$0xff]
  %v49 = vld [vmem:[%s0 + $0x148] sm:$0xff]
  %v50 = vld [vmem:[%s0 + $0x150] sm:$0xff]
  %v51 = vld [vmem:[%s0 + $0x158] sm:$0xff]
  %v52 = vld [vmem:[%s0 + $0x160] sm:$0xff]
  %v53 = vld [vmem:[%s0 + $0x168] sm:$0xff]
  %v54 = vld [vmem:[%s0 + $0x170] sm:$0xff]
  %v55 = vld [vmem:[%s0 + $0x178] sm:$0xff]
  %v56 = vld [vmem:[%s0 + $0x180] sm:$0xff]
  %v57 = vld [vmem:[%s0 + $0x188] sm:$0xff]
  %v58 = vld [vmem:[%s0 + $0x190] sm:$0xff]
  %v59 = vld [vmem:[%s0 + $0x198] sm:$0xff]
  %v60 = vld [vmem:[%s0 + $0x1a0] sm:$0xff]
  %v61 = vld [vmem:[%s0 + $0x1a8] sm:$0xff]
  %v62 = vld [vmem:[%s0 + $0x1b0] sm:$0xff]
  %v63 = vld [vmem:[%s0 + $0x1b8] sm:$0xff]
  %v64 = vld [vmem:[%s0 + $0x1c0] sm:$0xff]
  %v65 = vld [vmem:[%s0 + $0x1c8] sm:$0xff]
  %v66 = vld [vmem:[%s0 + $0x1d0] sm:$0xff]
  %v67 = vld [vmem:[%s0 + $0x1d8] sm:$0xff]
  %v68 = vld [vmem:[%s0 + $0x1e0] sm:$0xff]
  %v69 = vld [vmem:[%s0 + $0x1e8] sm:$0xff]
  %v70 = vld [vmem:[%s0 + $0x1f0] sm:$0xff]
  %v71 = vld [vmem:[%s0 + $0x1f8] sm:$0xff]
  %v72 = vld [vmem:[%s0 + $0x200] sm:$0xff]
  %v73 = vld [vmem:[%s0 + $0x208] sm:$0xff]
  %v74 = vld [vmem:[%s0 + $0x210] sm:$0xff]
  %v75 = vld [vmem:[%s0 + $0x218] sm:$0xff]
  %v76 = vld [vmem:[%s0 + $0x220] sm:$0xff]
  %v77 = vld [vmem:[%s0 + $0x228] sm:$0xff]
  %v78 = vld [vmem:[%s0 + $0x230] sm:$0xff]
  %v79 = vld [vmem:[%s0 + $0x238] sm:$0xff]
  %v80 = vld [vmem:[%s0 + $0x240] sm:$0xff]
  %v81 = vld [vmem:[%s0 + $0x248] sm:$0xff]
  %v82 = vld [vmem:[%s0 + $0x250] sm:$0xff]
  %v83 = vld [vmem:[%s0 + $0x258] sm:$0xff]
  %v84 = vld [vmem:[%s0 + $0x260] sm:$0xff]
  %v85 = vld [vmem:[%s0 + $0x268] sm:$0xff]
  %v86 = vld [vmem:[%s0 + $0x270] sm:$0xff]
  %v87 = vld [vmem:[%s0 + $0x278] sm:$0xff]
  %v88 = vld [vmem:[%s0 + $0x280] sm:$0xff]
  %v89 = vld [vmem:[%s0 + $0x288] sm:$0xff]
  %v90 = vld [vmem:[%s0 + $0x290] sm:$0xff]
  %v91 = vld [vmem:[%s0 + $0x298] sm:$0xff]
  %v92 = vld [vmem:[%s0 + $0x2a0] sm:$0xff]
  %v93 = vld [vmem:[%s0 + $0x2a8] sm:$0xff]
  %v94 = vld [vmem:[%s0 + $0x2b0] sm:$0xff]
  %v95 = vld [vmem:[%s0 + $0x2b8] sm:$0xff]
  %v96 = vld [vmem:[%s0 + $0x2c0] sm:$0xff]
  %v97 = vld [vmem:[%s0 + $0x2c8] sm:$0xff]
  %v98 = vld [vmem:[%s0 + $0x2d0] sm:$0xff]
  %v99 = vld [vmem:[%s0 + $0x2d8] sm:$0xff]
  %v100 = vld [vmem:[%s0 + $0x2e0] sm:$0xff]
  %v101 = vld [vmem:[%s0 + $0x2e8] sm:$0xff]
  %v102 = vld [vmem:[%s0 + $0x2f0] sm:$0xff]
  %v103 = vld [vmem:[%s0 + $0x2f8] sm:$0xff]
  %v104 = vld [vmem:[%s0 + $0x300] sm:$0xff]
  %v105 = vld [vmem:[%s0 + $0x308] sm:$0xff]
  %v106 = vld [vmem:[%s0 + $0x310] sm:$0xff]
  %v107 = vld [vmem:[%s0 + $0x318] sm:$0xff]
  %v108 = vld [vmem:[%s0 + $0x320] sm:$0xff]
  %v109 = vld [vmem:[%s0 + $0x328] sm:$0xff]
  %v110 = vld [vmem:[%s0 + $0x330] sm:$0xff]
  %v111 = vld [vmem:[%s0 + $0x338] sm:$0xff]
  %v112 = vld [vmem:[%s0 + $0x340] sm:$0xff]
  %v113 = vld [vmem:[%s0 + $0x348] sm:$0xff]
  %v114 = vld [vmem:[%s0 + $0x350] sm:$0xff]
  %v115 = vld [vmem:[%s0 + $0x358] sm:$0xff]
  %v116 = vld [vmem:[%s0 + $0x360] sm:$0xff]
  %v117 = vld [vmem:[%s0 + $0x368] sm:$0xff]
  %v118 = vld [vmem:[%s0 + $0x370] sm:$0xff]
  %v119 = vld [vmem:[%s0 + $0x378] sm:$0xff]
  %v120 = vld [vmem:[%s0 + $0x380] sm:$0xff]
  %v121 = vld [vmem:[%s0 + $0x388] sm:$0xff]
  %v122 = vld [vmem:[%s0 + $0x390] sm:$0xff]
  %v123 = vld [vmem:[%s0 + $0x398] sm:$0xff]
  %v124 = vld [vmem:[%s0 + $0x3a0] sm:$0xff]
  %v125 = vld [vmem:[%s0 + $0x3a8] sm:$0xff]
  %v126 = vld [vmem:[%s0 + $0x3b0] sm:$0xff]
  %v127 = vld [vmem:[%s0 + $0x3b8] sm:$0xff]
  %v128 = vld [vmem:[%s0 + $0x3c0] sm:$0xff]
  %v129 = vld [vmem:[%s0 + $0x3c8] sm:$0xff]
  %v130 = vld [vmem:[%s0 + $0x3d0] sm:$0xff]
  %v131 = vld [vmem:[%s0 + $0x3d8] sm:$0xff]
  %v132 = vld [vmem:[%s0 + $0x3e0] sm:$0xff]
  %v133 = vld [vmem:[%s0 + $0x3e8] sm:$0xff]
  %v134 = vld [vmem:[%s0 + $0x3f0] sm:$0xff]
  %v135 = vld [vmem:[%s0 + $0x3f8] sm:$0xff]
  %v136 = vld [vmem:[%s0 + $0x400] sm:$0xff]
  %v137 = vld [vmem:[%s0 + $0x408] sm:$0xff]
  %v138 = vld [vmem:[%s0 + $0x410] sm:$0xff]
  %v139 = vld [vmem:[%s0 + $0x418] sm:$0xff]
  %v140 = vld [vmem:[%s0 + $0x420] sm:$0xff]
  %v141 = vld [vmem:[%s0 + $0x428] sm:$0xff]
  %v142 = vld [vmem:[%s0 + $0x430] sm:$0xff]
  %v143 = vld [vmem:[%s0 + $0x438] sm:$0xff]
  %v144 = vld [vmem:[%s0 + $0x440] sm:$0xff]
  %v145 = vld [vmem:[%s0 + $0x448] sm:$0xff]
  %v146 = vld [vmem:[%s0 + $0x450] sm:$0xff]
  %v147 = vld [vmem:[%s0 + $0x458] sm:$0xff]
  %v148 = vld [vmem:[%s0 + $0x460] sm:$0xff]
  %v149 = vld [vmem:[%s0 + $0x468] sm:$0xff]
  %v150 = vld [vmem:[%s0 + $0x470] sm:$0xff]
  %v151 = vld [vmem:[%s0 + $0x478] sm:$0xff]
  %v152 = vld [vmem:[%s0 + $0x480] sm:$0xff]
  %v153 = vld [vmem:[%s0 + $0x488] sm:$0xff]
  %v154 = vld [vmem:[%s0 + $0x490] sm:$0xff]
  %155 = vst [vmem:[%s1] sm:$0xff] %v8
  %156 = vst [vmem:[%s1 + $0x8] sm:$0xff] %v9
  %vm157 = vcmask 56320
  %158 = vst.msk [vmem:[%s1 + $0x10] sm:$0xff] %vm157, %v10
  %159 = vst [vmem:[%s1 + $0x18] sm:$0xff] %v11
  %160 = vst [vmem:[%s1 + $0x20] sm:$0xff] %v12
  %161 = vst.msk [vmem:[%s1 + $0x28] sm:$0xff] %vm157, %v13
  %162 = vst [vmem:[%s1 + $0x30] sm:$0xff] %v14
  %163 = vst [vmem:[%s1 + $0x38] sm:$0xff] %v15
  %164 = vst.msk [vmem:[%s1 + $0x40] sm:$0xff] %vm157, %v16
  %165 = vst [vmem:[%s1 + $0x48] sm:$0xff] %v17
  %166 = vst [vmem:[%s1 + $0x50] sm:$0xff] %v18
  %167 = vst.msk [vmem:[%s1 + $0x58] sm:$0xff] %vm157, %v19
  %168 = vst [vmem:[%s1 + $0x60] sm:$0xff] %v20
  %169 = vst [vmem:[%s1 + $0x68] sm:$0xff] %v21
  %170 = vst.msk [vmem:[%s1 + $0x70] sm:$0xff] %vm157, %v22
  %171 = vst [vmem:[%s1 + $0x78] sm:$0xff] %v23
  %172 = vst [vmem:[%s1 + $0x80] sm:$0xff] %v24
  %173 = vst.msk [vmem:[%s1 + $0x88] sm:$0xff] %vm157, %v25
  %174 = vst [vmem:[%s1 + $0x90] sm:$0xff] %v26
  %175 = vst [vmem:[%s1 + $0x98] sm:$0xff] %v27
  %176 = vst.msk [vmem:[%s1 + $0xa0] sm:$0xff] %vm157, %v28
  %177 = vst [vmem:[%s1 + $0xa8] sm:$0xff] %v29
  %178 = vst [vmem:[%s1 + $0xb0] sm:$0xff] %v30
  %179 = vst.msk [vmem:[%s1 + $0xb8] sm:$0xff] %vm157, %v31
  %180 = vst [vmem:[%s1 + $0xc0] sm:$0xff] %v32
  %181 = vst [vmem:[%s1 + $0xc8] sm:$0xff] %v33
  %182 = vst.msk [vmem:[%s1 + $0xd0] sm:$0xff] %vm157, %v34
  %183 = vst [vmem:[%s1 + $0xd8] sm:$0xff] %v35
  %184 = vst [vmem:[%s1 + $0xe0] sm:$0xff] %v36
  %185 = vst.msk [vmem:[%s1 + $0xe8] sm:$0xff] %vm157, %v37
  %186 = vst [vmem:[%s1 + $0xf0] sm:$0xff] %v38
  %187 = vst [vmem:[%s1 + $0xf8] sm:$0xff] %v39
  %188 = vst.msk [vmem:[%s1 + $0x100] sm:$0xff] %vm157, %v40
  %189 = vst [vmem:[%s1 + $0x108] sm:$0xff] %v41
  %190 = vst [vmem:[%s1 + $0x110] sm:$0xff] %v42
  %191 = vst.msk [vmem:[%s1 + $0x118] sm:$0xff] %vm157, %v43
  %192 = vst [vmem:[%s1 + $0x120] sm:$0xff] %v44
  %193 = vst [vmem:[%s1 + $0x128] sm:$0xff] %v45
  %194 = vst.msk [vmem:[%s1 + $0x130] sm:$0xff] %vm157, %v46
  %195 = vst [vmem:[%s1 + $0x138] sm:$0xff] %v47
  %196 = vst [vmem:[%s1 + $0x140] sm:$0xff] %v48
  %197 = vst.msk [vmem:[%s1 + $0x148] sm:$0xff] %vm157, %v49
  %198 = vst [vmem:[%s1 + $0x150] sm:$0xff] %v50
  %199 = vst [vmem:[%s1 + $0x158] sm:$0xff] %v51
  %200 = vst.msk [vmem:[%s1 + $0x160] sm:$0xff] %vm157, %v52
  %201 = vst [vmem:[%s1 + $0x168] sm:$0xff] %v53
  %202 = vst [vmem:[%s1 + $0x170] sm:$0xff] %v54
  %203 = vst.msk [vmem:[%s1 + $0x178] sm:$0xff] %vm157, %v55
  %204 = vst [vmem:[%s1 + $0x180] sm:$0xff] %v56
  %205 = vst [vmem:[%s1 + $0x188] sm:$0xff] %v57
  %206 = vst.msk [vmem:[%s1 + $0x190] sm:$0xff] %vm157, %v58
  %207 = vst [vmem:[%s1 + $0x198] sm:$0xff] %v59
  %208 = vst [vmem:[%s1 + $0x1a0] sm:$0xff] %v60
  %209 = vst.msk [vmem:[%s1 + $0x1a8] sm:$0xff] %vm157, %v61
  %210 = vst [vmem:[%s1 + $0x1b0] sm:$0xff] %v62
  %211 = vst [vmem:[%s1 + $0x1b8] sm:$0xff] %v63
  %212 = vst.msk [vmem:[%s1 + $0x1c0] sm:$0xff] %vm157, %v64
  %213 = vst [vmem:[%s1 + $0x1c8] sm:$0xff] %v65
  %214 = vst [vmem:[%s1 + $0x1d0] sm:$0xff] %v66
  %215 = vst.msk [vmem:[%s1 + $0x1d8] sm:$0xff] %vm157, %v67
  %216 = vst [vmem:[%s1 + $0x1e0] sm:$0xff] %v68
  %217 = vst [vmem:[%s1 + $0x1e8] sm:$0xff] %v69
  %218 = vst.msk [vmem:[%s1 + $0x1f0] sm:$0xff] %vm157, %v70
  %219 = vst [vmem:[%s1 + $0x1f8] sm:$0xff] %v71
  %220 = vst [vmem:[%s1 + $0x200] sm:$0xff] %v72
  %221 = vst.msk [vmem:[%s1 + $0x208] sm:$0xff] %vm157, %v73
  %222 = vst [vmem:[%s1 + $0x210] sm:$0xff] %v74
  %223 = vst [vmem:[%s1 + $0x218] sm:$0xff] %v75
  %224 = vst.msk [vmem:[%s1 + $0x220] sm:$0xff] %vm157, %v76
  %225 = vst [vmem:[%s1 + $0x228] sm:$0xff] %v77
  %226 = vst [vmem:[%s1 + $0x230] sm:$0xff] %v78
  %227 = vst.msk [vmem:[%s1 + $0x238] sm:$0xff] %vm157, %v79
  %228 = vst [vmem:[%s1 + $0x240] sm:$0xff] %v80
  %229 = vst [vmem:[%s1 + $0x248] sm:$0xff] %v81
  %230 = vst.msk [vmem:[%s1 + $0x250] sm:$0xff] %vm157, %v82
  %231 = vst [vmem:[%s1 + $0x258] sm:$0xff] %v83
  %232 = vst [vmem:[%s1 + $0x260] sm:$0xff] %v84
  %233 = vst.msk [vmem:[%s1 + $0x268] sm:$0xff] %vm157, %v85
  %234 = vst [vmem:[%s1 + $0x270] sm:$0xff] %v86
  %235 = vst [vmem:[%s1 + $0x278] sm:$0xff] %v87
  %236 = vst.msk [vmem:[%s1 + $0x280] sm:$0xff] %vm157, %v88
  %237 = vst [vmem:[%s1 + $0x288] sm:$0xff] %v89
  %238 = vst [vmem:[%s1 + $0x290] sm:$0xff] %v90
  %239 = vst.msk [vmem:[%s1 + $0x298] sm:$0xff] %vm157, %v91
  %240 = vst [vmem:[%s1 + $0x2a0] sm:$0xff] %v92
  %241 = vst [vmem:[%s1 + $0x2a8] sm:$0xff] %v93
  %242 = vst.msk [vmem:[%s1 + $0x2b0] sm:$0xff] %vm157, %v94
  %243 = vst [vmem:[%s1 + $0x2b8] sm:$0xff] %v95
  %244 = vst [vmem:[%s1 + $0x2c0] sm:$0xff] %v96
  %245 = vst.msk [vmem:[%s1 + $0x2c8] sm:$0xff] %vm157, %v97
  %246 = vst [vmem:[%s1 + $0x2d0] sm:$0xff] %v98
  %247 = vst [vmem:[%s1 + $0x2d8] sm:$0xff] %v99
  %248 = vst.msk [vmem:[%s1 + $0x2e0] sm:$0xff] %vm157, %v100
  %249 = vst [vmem:[%s1 + $0x2e8] sm:$0xff] %v101
  %250 = vst [vmem:[%s1 + $0x2f0] sm:$0xff] %v102
  %251 = vst.msk [vmem:[%s1 + $0x2f8] sm:$0xff] %vm157, %v103
  %252 = vst [vmem:[%s1 + $0x300] sm:$0xff] %v104
  %253 = vst [vmem:[%s1 + $0x308] sm:$0xff] %v105
  %254 = vst.msk [vmem:[%s1 + $0x310] sm:$0xff] %vm157, %v106
  %255 = vst [vmem:[%s1 + $0x318] sm:$0xff] %v107
  %256 = vst [vmem:[%s1 + $0x320] sm:$0xff] %v108
  %257 = vst.msk [vmem:[%s1 + $0x328] sm:$0xff] %vm157, %v109
  %258 = vst [vmem:[%s1 + $0x330] sm:$0xff] %v110
  %259 = vst [vmem:[%s1 + $0x338] sm:$0xff] %v111
  %260 = vst.msk [vmem:[%s1 + $0x340] sm:$0xff] %vm157, %v112
  %261 = vst [vmem:[%s1 + $0x348] sm:$0xff] %v113
  %262 = vst [vmem:[%s1 + $0x350] sm:$0xff] %v114
  %263 = vst.msk [vmem:[%s1 + $0x358] sm:$0xff] %vm157, %v115
  %264 = vst [vmem:[%s1 + $0x360] sm:$0xff] %v116
  %265 = vst [vmem:[%s1 + $0x368] sm:$0xff] %v117
  %266 = vst.msk [vmem:[%s1 + $0x370] sm:$0xff] %vm157, %v118
  %267 = vst [vmem:[%s1 + $0x378] sm:$0xff] %v119
  %268 = vst [vmem:[%s1 + $0x380] sm:$0xff] %v120
  %269 = vst.msk [vmem:[%s1 + $0x388] sm:$0xff] %vm157, %v121
  %270 = vst [vmem:[%s1 + $0x390] sm:$0xff] %v122
  %271 = vst [vmem:[%s1 + $0x398] sm:$0xff] %v123
  %272 = vst.msk [vmem:[%s1 + $0x3a0] sm:$0xff] %vm157, %v124
  %273 = vst [vmem:[%s1 + $0x3a8] sm:$0xff] %v125
  %274 = vst [vmem:[%s1 + $0x3b0] sm:$0xff] %v126
  %275 = vst.msk [vmem:[%s1 + $0x3b8] sm:$0xff] %vm157, %v127
  %276 = vst [vmem:[%s1 + $0x3c0] sm:$0xff] %v128
  %277 = vst [vmem:[%s1 + $0x3c8] sm:$0xff] %v129
  %278 = vst.msk [vmem:[%s1 + $0x3d0] sm:$0xff] %vm157, %v130
  %279 = vst [vmem:[%s1 + $0x3d8] sm:$0xff] %v131
  %280 = vst [vmem:[%s1 + $0x3e0] sm:$0xff] %v132
  %281 = vst.msk [vmem:[%s1 + $0x3e8] sm:$0xff] %vm157, %v133
  %282 = vst [vmem:[%s1 + $0x3f0] sm:$0xff] %v134
  %283 = vst [vmem:[%s1 + $0x3f8] sm:$0xff] %v135
  %284 = vst.msk [vmem:[%s1 + $0x400] sm:$0xff] %vm157, %v136
  %285 = vst [vmem:[%s1 + $0x408] sm:$0xff] %v137
  %286 = vst [vmem:[%s1 + $0x410] sm:$0xff] %v138
  %287 = vst.msk [vmem:[%s1 + $0x418] sm:$0xff] %vm157, %v139
  %288 = vst [vmem:[%s1 + $0x420] sm:$0xff] %v140
  %289 = vst [vmem:[%s1 + $0x428] sm:$0xff] %v141
  %290 = vst.msk [vmem:[%s1 + $0x430] sm:$0xff] %vm157, %v142
  %291 = vst [vmem:[%s1 + $0x438] sm:$0xff] %v143
  %292 = vst [vmem:[%s1 + $0x440] sm:$0xff] %v144
  %293 = vst.msk [vmem:[%s1 + $0x448] sm:$0xff] %vm157, %v145
  %294 = vst [vmem:[%s1 + $0x450] sm:$0xff] %v146
  %295 = vst [vmem:[%s1 + $0x458] sm:$0xff] %v147
  %296 = vst.msk [vmem:[%s1 + $0x460] sm:$0xff] %vm157, %v148
  %297 = vst [vmem:[%s1 + $0x468] sm:$0xff] %v149
  %298 = vst [vmem:[%s1 + $0x470] sm:$0xff] %v150
  %299 = vst.msk [vmem:[%s1 + $0x478] sm:$0xff] %vm157, %v151
  %300 = vst [vmem:[%s1 + $0x480] sm:$0xff] %v152
  %301 = vst [vmem:[%s1 + $0x488] sm:$0xff] %v153
  %302 = vst.msk [vmem:[%s1 + $0x490] sm:$0xff] %vm157, %v154
  // Predicated region
  $region6: #{continous_rot_repr_decoder.1} parent=0 // pred_check
    _
  $region7: #{continous_rot_repr_decoder.1} parent=0 // pred_check_branch
    %304 = sbr.rel (0) target = $region9
  $region8: #{continous_rot_repr_decoder.1} parent=0 // pred_region
    _
  $region9: #{continous_rot_repr_decoder.1} parent=0 // pred_fallthru
    _
  // Predicated region
  $region10: #{continous_rot_repr_decoder.1} parent=0 // pred_check
    _
  $region11: #{continous_rot_repr_decoder.1} parent=0 // pred_check_branch
    %306 = sbr.rel (0) target = $region13
  $region12: #{continous_rot_repr_decoder.1} parent=0 // pred_region
    _
  $region13: #{continous_rot_repr_decoder.1} parent=0 // pred_fallthru
    _

</llo_original>
